<compile_context>
chip_gen: v7x
topology: tpu7x:2x2x1
jax: 0.10.0
libtpu: 0.0.40
codegen_flags: <defaults>
</compile_context>

<pallas_src>
import math
import functools

import jax
import jax.numpy as jnp
from jax import lax
from jax.experimental import pallas as pl
from jax.experimental.pallas import tpu as pltpu


# ----------------------------- kernel body -----------------------------------


def _mlp_encode_kernel(x_ref, xc_ref, w_ref, o_ref, acc_ref, *,
                       step_size, lambd, compute_dtype):
    # x_ref : (tm, Dp)  full-width row tile of x (resident across the k axis)
    # xc_ref: (tm, tk)  k-th column block of x
    # w_ref : (tk, Dp)  k-th row block of W (streamed)
    # o_ref : (tm, Dp)  output row tile (written only on the last k step)
    # acc_ref: (tm, Dp) f32 accumulator scratch
    k = pl.program_id(1)
    nk = pl.num_programs(1)

    @pl.when(k == 0)
    def _init():
        acc_ref[...] = jnp.zeros_like(acc_ref)

    x = x_ref[...]
    xc = xc_ref[...]
    w_blk = w_ref[...]

    if compute_dtype is not None:
        x_mm = x.astype(compute_dtype)
        w_mm = w_blk.astype(compute_dtype)
    else:
        x_mm = x
        w_mm = w_blk

    # (x @ W^T)[:, k-block] == x @ W_blk^T.  Contract dim 1 with dim 1 so no
    # full-size transposed weight is ever materialized.
    xwt = lax.dot_general(
        x_mm, w_mm,
        dimension_numbers=(((1,), (1,)), ((), ())),
        preferred_element_type=jnp.float32,
    )  # (tm, tk) f32

    # Fused update: (x - x @ W^T) @ W, accumulated block-by-block over W rows.
    t_blk = xc.astype(jnp.float32) - xwt
    acc_ref[...] += jnp.dot(
        t_blk.astype(w_mm.dtype), w_mm, preferred_element_type=jnp.float32
    )

    @pl.when(k == nk - 1)
    def _finalize():
        grad = x.astype(jnp.float32) + step_size * acc_ref[...]
        out = jnp.maximum(jnp.abs(grad) - step_size * lambd, 0.0)
        o_ref[...] = out.astype(o_ref.dtype)


# ----------------------------- wrapper ----------------------------------------


def _round_up(v, m):
    return (v + m - 1) // m * m


def _device_kind():
    try:
        return jax.devices()[0].device_kind.lower()
    except Exception:
        return ""


def _is_v5e():
    k = _device_kind()
    return ("v5 lite" in k) or ("v5e" in k) or ("v5lite" in k)


def _is_multi_tc_chip():
    # v7x has 2 TensorCores per chip; v5e/v6e have 1.
    return "v7" in _device_kind()


def _vmem_capacity_bytes():
    try:
        return int(pltpu.get_tpu_info().vmem_capacity_bytes)
    except Exception:
        return 64 << 20  # conservative: v7x per-TC capacity


def mlp_encode(x, weight, *, step_size=0.5, lambd=0.5, tm=None, tk=None,
               compute_dtype=None):
    """x: (B, D), weight: (D, D) -> (B, D), same dtype as x."""
    B, D = x.shape
    assert weight.shape == (D, D)

    in_itemsize = jnp.dtype(x.dtype).itemsize
    w_itemsize = jnp.dtype(weight.dtype).itemsize

    # Lane-dense output: pad the feature dim to a multiple of 128.
    Dp = _round_up(D, 128)

    # Row tile: chip default (v5e MXU is 128-wide -> tm=128; v6e/v7x -> 256),
    # rounded to the dtype's packed sublane multiple.
    sub = {1: 32, 2: 16}.get(in_itemsize, 8)
    if tm is None:
        tm = 128 if _is_v5e() else 256
    tm_eff = _round_up(min(tm, _round_up(B, sub)), sub)
    # v7x: keep both TensorCores busy — ensure >= 2 steps on the parallel axis
    # whenever the batch allows it.
    if _is_multi_tc_chip() and pl.cdiv(B, tm_eff) < 2 and B > sub:
        tm_eff = _round_up(pl.cdiv(B, 2), sub)

    # Weight row-block size: largest 128-multiple <= 512 that divides Dp
    # (128 always works since Dp is a multiple of 128).
    if tk is None:
        tk = 128
        for cand in (512, 384, 256, 128):
            if Dp % cand == 0:
                tk = cand
                break
    assert Dp % tk == 0 and tk % 128 == 0

    # Pad only the feature dim; partial batch blocks are masked by Pallas, so no
    # extra HBM pass over x just to round the batch.
    x_p = x if Dp == D else jnp.zeros((B, Dp), x.dtype).at[:, :D].set(x)
    w_p = (weight if Dp == D
           else jnp.zeros((Dp, Dp), weight.dtype).at[:D, :D].set(weight))

    nm = pl.cdiv(B, tm_eff)
    nk = Dp // tk
    grid = (nm, nk)

    kernel = functools.partial(
        _mlp_encode_kernel,
        step_size=float(step_size),
        lambd=float(lambd),
        compute_dtype=compute_dtype,
    )

    # VMEM budget: double-buffered x / x-cols / W-block / out tiles, f32
    # accumulator scratch, plus f32 temps and slack.  Clamp chip-aware.
    vmem_needed = (
        2 * tm_eff * Dp * in_itemsize        # full-width x row tile
        + 2 * tm_eff * tk * in_itemsize      # column block of x
        + 2 * tk * Dp * w_itemsize           # streamed W row block
        + 2 * tm_eff * Dp * in_itemsize      # output tile
        + tm_eff * Dp * 4                    # f32 accumulator scratch
        + 3 * tm_eff * Dp * 4                # f32 temps headroom
        + (2 << 20)
    )
    cap = _vmem_capacity_bytes()
    vmem_limit = int(min(max(vmem_needed, 32 << 20), cap - (8 << 20)))
    vmem_limit = max(vmem_limit, 16 << 20)

    # Advisory cost: two (B, Dp) x (Dp, Dp)-sized matmuls; W is re-streamed once
    # per row tile, x is read twice (full-width + column-blocked), out written once.
    flops = 4 * B * Dp * Dp
    bytes_accessed = (3 * B * Dp * in_itemsize + nm * Dp * Dp * w_itemsize)
    cost = pl.CostEstimate(flops=int(flops), transcendentals=0,
                           bytes_accessed=int(bytes_accessed))

    out_p = pl.pallas_call(
        kernel,
        out_shape=jax.ShapeDtypeStruct((B, Dp), x.dtype),
        grid_spec=pltpu.PrefetchScalarGridSpec(
            num_scalar_prefetch=0,
            grid=grid,
            in_specs=[
                pl.BlockSpec((tm_eff, Dp), lambda i, k: (i, 0)),  # x, resident over k
                pl.BlockSpec((tm_eff, tk), lambda i, k: (i, k)),  # x column block k
                pl.BlockSpec((tk, Dp), lambda i, k: (k, 0)),      # W row block k
            ],
            out_specs=pl.BlockSpec((tm_eff, Dp), lambda i, k: (i, 0)),
            scratch_shapes=[pltpu.VMEM((tm_eff, Dp), jnp.float32)],
        ),
        compiler_params=pltpu.CompilerParams(
            dimension_semantics=("parallel", "arbitrary"),
            vmem_limit_bytes=vmem_limit,
        ),
        cost_estimate=cost,
    )(x_p, x_p, w_p)

    if Dp != D:
        out_p = out_p[:, :D]
    return out_p


def mlp_encode_ref(x, weight, *, step_size=0.5, lambd=0.5):
    """Pure-JAX reference mirroring the PyTorch forward (3 explicit matmuls)."""
    z_halfdt = x @ weight.T
    z_halfdtd = z_halfdt @ weight
    z_halfd = x @ weight
    grad_step = x + step_size * (z_halfd - z_halfdtd)
    return jnp.maximum(jnp.abs(grad_step) - step_size * lambd, 0.0)


if __name__ == "__main__":
    key = jax.random.PRNGKey(0)
    k_x, k_w = jax.random.split(key)

    B, D = 8, 32
    step_size, lambd = 0.5, 0.5

    x = jax.random.normal(k_x, (B, D), dtype=jnp.float32)

    # Deterministic kaiming_uniform_-style init: U(-bound, bound), bound = sqrt(6 / fan_in)
    bound = math.sqrt(6.0 / D)
    weight = jax.random.uniform(
        k_w, (D, D), dtype=jnp.float32, minval=-bound, maxval=bound
    )

    out = mlp_encode(x, weight, step_size=step_size, lambd=lambd)
    out = jax.block_until_ready(out)

    ref = mlp_encode_ref(x, weight, step_size=step_size, lambd=lambd)
    assert out.shape == (B, D)
    # Fused (x - x@W.T)@W is exact algebra; allow f32 rounding-level differences.
    assert jnp.allclose(out, ref, atol=1e-4, rtol=1e-4), "mismatch vs reference"

    print("KERNEL_OK")
</pallas_src>

<mosaic_0001>
module attributes {stable_mosaic.version = 11 : i64} {
  func.func @_mlp_encode_kernel(%arg0: i32, %arg1: i32, %arg2: memref<8x128xf32, #tpu.memory_space<vmem>>, %arg3: memref<8x128xf32, #tpu.memory_space<vmem>>, %arg4: memref<128x128xf32, #tpu.memory_space<vmem>>, %arg5: memref<8x128xf32, #tpu.memory_space<vmem>>, %arg6: memref<8x128xf32, #tpu.memory_space<vmem>>) attributes {dimension_semantics = [#tpu.dimension_semantics<parallel>, #tpu.dimension_semantics<arbitrary>], iteration_bounds = array<i64: 1, 1>, scalar_prefetch = 0 : i64, scratch_operands = 1 : i64, tpu.core_type = #tpu.core_type<tc>, window_params = [{transform_indices = @transform_0, window_bounds = array<i64: 8, 128>}, {transform_indices = @transform_1, window_bounds = array<i64: 8, 128>}, {transform_indices = @transform_2, window_bounds = array<i64: 128, 128>}, {transform_indices = @transform_3, window_bounds = array<i64: 8, 128>}]} {
    %c0_i32 = arith.constant 0 : i32
    %0 = arith.cmpi eq, %arg1, %c0_i32 : i32
    %1 = arith.extui %0 : i1 to i32
    %c0_i32_0 = arith.constant 0 : i32
    %2 = arith.cmpi ne, %1, %c0_i32_0 : i32
    scf.if %2 {
      %cst_13 = arith.constant 0.000000e+00 : f32
      %15 = vector.broadcast %cst_13 : f32 to vector<8x128xf32>
      %c0_14 = arith.constant 0 : index
      %c0_15 = arith.constant 0 : index
      %16 = vector.load %arg6[%c0_14, %c0_15] : memref<8x128xf32, #tpu.memory_space<vmem>>, vector<8x128xf32>
      tpu.vector_store %arg6[%c0_14, %c0_15], %15 {strides = array<i32>} : memref<8x128xf32, #tpu.memory_space<vmem>>, vector<8x128xf32>,
    } else {
    }
    %c0 = arith.constant 0 : index
    %c0_1 = arith.constant 0 : index
    %3 = vector.load %arg2[%c0, %c0_1] : memref<8x128xf32, #tpu.memory_space<vmem>>, vector<8x128xf32>
    %c0_2 = arith.constant 0 : index
    %c0_3 = arith.constant 0 : index
    %4 = vector.load %arg3[%c0_2, %c0_3] : memref<8x128xf32, #tpu.memory_space<vmem>>, vector<8x128xf32>
    %c0_4 = arith.constant 0 : index
    %c0_5 = arith.constant 0 : index
    %5 = vector.load %arg4[%c0_4, %c0_5] : memref<128x128xf32, #tpu.memory_space<vmem>>, vector<128x128xf32>
    %cst = arith.constant dense<0.000000e+00> : vector<8x128xf32>
    %6 = tpu.matmul %3, %5, %cst {dimension_numbers = #tpu.dot_dimension_numbers<[1], [1], [0], [0], [0, 0, 1, 0], [], []>} : vector<8x128xf32>, vector<128x128xf32>, vector<8x128xf32> -> vector<8x128xf32>
    %7 = arith.subf %4, %6 : vector<8x128xf32>
    %c0_6 = arith.constant 0 : index
    %c0_7 = arith.constant 0 : index
    %8 = vector.load %arg6[%c0_6, %c0_7] : memref<8x128xf32, #tpu.memory_space<vmem>>, vector<8x128xf32>
    %cst_8 = arith.constant dense<0.000000e+00> : vector<8x128xf32>
    %9 = tpu.matmul %7, %5, %cst_8 {dimension_numbers = #tpu.dot_dimension_numbers<[1], [0], [0], [1], [0, 0, 1, 1], [], []>} : vector<8x128xf32>, vector<128x128xf32>, vector<8x128xf32> -> vector<8x128xf32>
    %10 = arith.addf %8, %9 : vector<8x128xf32>
    %c0_9 = arith.constant 0 : index
    %c0_10 = arith.constant 0 : index
    %11 = vector.load %arg6[%c0_9, %c0_10] : memref<8x128xf32, #tpu.memory_space<vmem>>, vector<8x128xf32>
    tpu.vector_store %arg6[%c0_9, %c0_10], %10 {strides = array<i32>} : memref<8x128xf32, #tpu.memory_space<vmem>>, vector<8x128xf32>,
    %c0_i32_11 = arith.constant 0 : i32
    %12 = arith.cmpi eq, %arg1, %c0_i32_11 : i32
    %13 = arith.extui %12 : i1 to i32
    %c0_i32_12 = arith.constant 0 : i32
    %14 = arith.cmpi ne, %13, %c0_i32_12 : i32
    scf.if %14 {
      %c0_13 = arith.constant 0 : index
      %c0_14 = arith.constant 0 : index
      %15 = vector.load %arg6[%c0_13, %c0_14] : memref<8x128xf32, #tpu.memory_space<vmem>>, vector<8x128xf32>
      %cst_15 = arith.constant 5.000000e-01 : f32
      %16 = vector.broadcast %cst_15 : f32 to vector<8x128xf32>
      %17 = arith.mulf %16, %15 : vector<8x128xf32>
      %18 = arith.addf %3, %17 : vector<8x128xf32>
      %19 = math.absf %18 : vector<8x128xf32>
      %cst_16 = arith.constant 2.500000e-01 : f32
      %20 = vector.broadcast %cst_16 : f32 to vector<8x128xf32>
      %21 = arith.subf %19, %20 : vector<8x128xf32>
      %cst_17 = arith.constant 0.000000e+00 : f32
      %22 = vector.broadcast %cst_17 : f32 to vector<8x128xf32>
      %23 = arith.maximumf %21, %22 : vector<8x128xf32>
      %c0_18 = arith.constant 0 : index
      %c0_19 = arith.constant 0 : index
      %24 = vector.load %arg5[%c0_18, %c0_19] : memref<8x128xf32, #tpu.memory_space<vmem>>, vector<8x128xf32>
      tpu.vector_store %arg5[%c0_18, %c0_19], %23 {strides = array<i32>} : memref<8x128xf32, #tpu.memory_space<vmem>>, vector<8x128xf32>,
    } else {
    }
    return
  }
  func.func @transform_0(%arg0: i32, %arg1: i32) -> (i32, i32) {
    %c0_i32 = arith.constant 0 : i32
    %c0_i32_0 = arith.constant 0 : i32
    return %arg0, %c0_i32 : i32, i32
  }
  func.func @transform_1(%arg0: i32, %arg1: i32) -> (i32, i32) {
    %c0_i32 = arith.constant 0 : i32
    return %arg0, %arg1 : i32, i32
  }
  func.func @transform_2(%arg0: i32, %arg1: i32) -> (i32, i32) {
    %c0_i32 = arith.constant 0 : i32
    %c0_i32_0 = arith.constant 0 : i32
    return %arg1, %c0_i32 : i32, i32
  }
  func.func @transform_3(%arg0: i32, %arg1: i32) -> (i32, i32) {
    %c0_i32 = arith.constant 0 : i32
    %c0_i32_0 = arith.constant 0 : i32
    return %arg0, %c0_i32 : i32, i32
  }
}

</mosaic_0001>

<llo_original>
// kernel: tpu_custom_call.1
$region0: #{tpu_custom_call.1}
  #allocation0 [shape = 'u32[]', space=smem, size = 0x4, offset = 0x4, fixed_abs, tag = 'smem constant byte address 0x4 - core index']
  #allocation1 [shape = 'u32[144,128]{1,0:T(1,128)}', space=vmem, size = 0x12000, scoped, tag = 'internal scratch']
  #allocation2 [shape = 'f32[8,128]{1,0:T(8,128)}', space=vmem, size = 0x1000, scoped, tag = 'scratch operand']
  %s0 = inlined_call_operand.hbm [shape: f32[8,128], index: 0, kind: input, shape index: {}]
  %s1 = inlined_call_operand.hbm [shape: f32[8,128], index: 1, kind: input, shape index: {}]
  %s2 = inlined_call_operand.hbm [shape: f32[128,128], index: 2, kind: input, shape index: {}]
  %s3 = inlined_call_operand.hbm [shape: f32[8,128], index: 3, kind: output, shape index: {}]
  %s4 = sld [smem:[#allocation0]]
  $region42: #{tpu_custom_call.1} parent=0
    _
  %s6 = ssub.s32 1, %s4
  %s7 = scalar_select 0, %s6, %s4
  $region1: #{tpu_custom_call.1} parent=0
    #allocation3 [shape = 'u8[4096]{0}', space=vmem, size = 0x1000, scoped, tag = 'input window, operand 0, single buffered']
    #allocation4 [shape = 's32[1]{0}', space=sflag, size = 0x4, scoped, tag = 'scoped memory for tpu_custom_call.1']
    #allocation5 [shape = 's32[1]{0}', space=sflag, size = 0x4, scoped, tag = 'scoped memory for tpu_custom_call.1']
    #allocation6 [shape = 'u8[4096]{0}', space=vmem, size = 0x1000, scoped, tag = 'input window, operand 1, single buffered']
    #allocation7 [shape = 's32[1]{0}', space=sflag, size = 0x4, scoped, tag = 'scoped memory for tpu_custom_call.1']
    #allocation8 [shape = 'u8[65536]{0}', space=vmem, size = 0x10000, scoped, tag = 'input window, operand 2, single buffered']
    #allocation9 [shape = 'u8[4096]{0}', space=vmem, size = 0x1000, scoped, tag = 'output window, operand 0, single buffered']
    %8 = vsyncpa [#allocation4], 0
    %9 = vsyncpa [#allocation7], 0
    %10 = vsyncpa [#allocation5], 0
    // Predicated region
    $region2: #{tpu_custom_call.1} parent=1 // pred_check
      _
    $region3: #{tpu_custom_call.1} parent=1 // pred_check_branch
      %12 = sbr.rel (0) target = $region5
    $region4: #{tpu_custom_call.1} parent=1 // pred_region
      %s14 = ssub.s32 128, 128
      %15 = vsyncadd [#allocation4], %s14
      %s17 = sshll.u32 [#allocation3], 4
      %s18 = int_to_ptr.vmem [resolvable:$true] %s17
      %20 = dma.hbm_to_vmem [thread:$0]  %s0, 128, %s18, [#allocation4]
    $region5: #{tpu_custom_call.1} parent=1 // pred_fallthru
      _
    // Predicated region
    $region6: #{tpu_custom_call.1} parent=1 // pred_check
      _
    $region7: #{tpu_custom_call.1} parent=1 // pred_check_branch
      %22 = sbr.rel (0) target = $region9
    $region8: #{tpu_custom_call.1} parent=1 // pred_region
      %s24 = ssub.s32 128, 128
      %25 = vsyncadd [#allocation7], %s24
      %s27 = sshll.u32 [#allocation6], 4
      %s28 = int_to_ptr.vmem [resolvable:$true] %s27
      %30 = dma.hbm_to_vmem [thread:$0]  %s1, 128, %s28, [#allocation7]
    $region9: #{tpu_custom_call.1} parent=1 // pred_fallthru
      _
    // Predicated region
    $region10: #{tpu_custom_call.1} parent=1 // pred_check
      _
    $region11: #{tpu_custom_call.1} parent=1 // pred_check_branch
      %32 = sbr.rel (0) target = $region13
    $region12: #{tpu_custom_call.1} parent=1 // pred_region
      %s34 = ssub.s32 2048, 2048
      %35 = vsyncadd [#allocation7], %s34
      %s36 = sshll.u32 [#allocation8], 4
      %s37 = int_to_ptr.vmem [resolvable:$true] %s36
      %42 = dma.hbm_to_vmem [thread:$0]  %s2, 2048, %s37, [#allocation7], 128, 128, 8
    $region13: #{tpu_custom_call.1} parent=1 // pred_fallthru
      _
    // Predicated region
    $region14: #{tpu_custom_call.1} parent=1 // pred_check
      _
    $region15: #{tpu_custom_call.1} parent=1 // pred_check_branch
      %44 = sbr.rel (0) target = $region17
    $region16: #{tpu_custom_call.1} parent=1 // pred_region
      %45 = dma.done [#allocation4], 128
    $region17: #{tpu_custom_call.1} parent=1 // pred_fallthru
      _
    // Predicated region
    $region18: #{tpu_custom_call.1} parent=1 // pred_check
      _
    $region19: #{tpu_custom_call.1} parent=1 // pred_check_branch
      %47 = sbr.rel (0) target = $region21
    $region20: #{tpu_custom_call.1} parent=1 // pred_region
      %48 = dma.done [#allocation7], 128
    $region21: #{tpu_custom_call.1} parent=1 // pred_fallthru
      _
    // Predicated region
    $region22: #{tpu_custom_call.1} parent=1 // pred_check
      _
    $region23: #{tpu_custom_call.1} parent=1 // pred_check_branch
      %50 = sbr.rel (0) target = $region25
    $region24: #{tpu_custom_call.1} parent=1 // pred_region
      %51 = dma.done [#allocation7], 2048
    $region25: #{tpu_custom_call.1} parent=1 // pred_fallthru
      _
    %p52 = scmp.eq.s32.totalorder 0, 0
    // Predicated region
    $region26: #{tpu_custom_call.1} parent=1 // pred_check
      %p53 = pneg %p52
    $region27: #{tpu_custom_call.1} parent=1 // pred_check_branch
      %55 = sbr.rel (%p53) target = $region29
    $region28: #{tpu_custom_call.1} parent=1 // pred_region
      %56 = vst [vmem:[#allocation2] sm:$0xff] 0.0
    $region29: #{tpu_custom_call.1} parent=1 // pred_fallthru
      _
    %v57 = vld [vmem:[#allocation3] sm:$0xff]
    %v58 = vld [vmem:[#allocation6] sm:$0xff]
    %v59 = vld [vmem:[#allocation8] sm:$0xff]
    %v60 = vld [vmem:[#allocation8 + $0x8] sm:$0xff]
    %v61 = vld [vmem:[#allocation8 + $0x10] sm:$0xff]
    %v62 = vld [vmem:[#allocation8 + $0x18] sm:$0xff]
    %v63 = vld [vmem:[#allocation8 + $0x20] sm:$0xff]
    %v64 = vld [vmem:[#allocation8 + $0x28] sm:$0xff]
    %v65 = vld [vmem:[#allocation8 + $0x30] sm:$0xff]
    %v66 = vld [vmem:[#allocation8 + $0x38] sm:$0xff]
    %v67 = vld [vmem:[#allocation8 + $0x40] sm:$0xff]
    %v68 = vld [vmem:[#allocation8 + $0x48] sm:$0xff]
    %v69 = vld [vmem:[#allocation8 + $0x50] sm:$0xff]
    %v70 = vld [vmem:[#allocation8 + $0x58] sm:$0xff]
    %v71 = vld [vmem:[#allocation8 + $0x60] sm:$0xff]
    %v72 = vld [vmem:[#allocation8 + $0x68] sm:$0xff]
    %v73 = vld [vmem:[#allocation8 + $0x70] sm:$0xff]
    %v74 = vld [vmem:[#allocation8 + $0x78] sm:$0xff]
    %75 = vmatprep.subr.mxu0 0.0
    %76 = vmatpush1.xpose.msra.mxu0 %v59
    %77 = vmatprep.subr.mxu0 0.0
    %78 = vmatpush1.xpose.msra.mxu0 %v60
    %79 = vmatprep.subr.mxu0 0.0
    %80 = vmatpush1.xpose.msra.mxu0 %v61
    %81 = vmatprep.subr.mxu0 0.0
    %82 = vmatpush1.xpose.msra.mxu0 %v62
    %83 = vmatprep.subr.mxu0 0.0
    %84 = vmatpush1.xpose.msra.mxu0 %v63
    %85 = vmatprep.subr.mxu0 0.0
    %86 = vmatpush1.xpose.msra.mxu0 %v64
    %87 = vmatprep.subr.mxu0 0.0
    %88 = vmatpush1.xpose.msra.mxu0 %v65
    %89 = vmatprep.subr.mxu0 0.0
    %90 = vmatpush1.xpose.msra.mxu0 %v66
    %91 = vmatprep.subr.mxu0 0.0
    %92 = vmatpush1.xpose.msra.mxu0 %v67
    %93 = vmatprep.subr.mxu0 0.0
    %94 = vmatpush1.xpose.msra.mxu0 %v68
    %95 = vmatprep.subr.mxu0 0.0
    %96 = vmatpush1.xpose.msra.mxu0 %v69
    %97 = vmatprep.subr.mxu0 0.0
    %98 = vmatpush1.xpose.msra.mxu0 %v70
    %99 = vmatprep.subr.mxu0 0.0
    %100 = vmatpush1.xpose.msra.mxu0 %v71
    %101 = vmatprep.subr.mxu0 0.0
    %102 = vmatpush1.xpose.msra.mxu0 %v72
    %103 = vmatprep.subr.mxu0 0.0
    %104 = vmatpush1.xpose.msra.mxu0 %v73
    %105 = vmatprep.subr.mxu0 0.0
    %106 = vmatpush1.xpose.msra.mxu0 %v74
    %107 = vmatprep.subr.mxu0 0.0
    %108 = vmatpush1.xpose.msra.mxu0 0.0
    %109 = vmatprep.subr.mxu0 0.0
    %110 = vmatpush1.xpose.msra.mxu0 0.0
    %111 = vmatprep.subr.mxu0 0.0
    %112 = vmatpush1.xpose.msra.mxu0 0.0
    %113 = vmatprep.subr.mxu0 0.0
    %114 = vmatpush1.xpose.msra.mxu0 0.0
    %115 = vmatprep.subr.mxu0 0.0
    %116 = vmatpush1.xpose.msra.mxu0 0.0
    %117 = vmatprep.subr.mxu0 0.0
    %118 = vmatpush1.xpose.msra.mxu0 0.0
    %119 = vmatprep.subr.mxu0 0.0
    %120 = vmatpush1.xpose.msra.mxu0 0.0
    %121 = vmatprep.subr.mxu0 0.0
    %122 = vmatpush1.xpose.msra.mxu0 0.0
    %123 = vmatprep.subr.mxu0 0.0
    %124 = vmatpush1.xpose.msra.mxu0 0.0
    %125 = vmatprep.subr.mxu0 0.0
    %126 = vmatpush1.xpose.msra.mxu0 0.0
    %127 = vmatprep.subr.mxu0 0.0
    %128 = vmatpush1.xpose.msra.mxu0 0.0
    %129 = vmatprep.subr.mxu0 0.0
    %130 = vmatpush1.xpose.msra.mxu0 0.0
    %131 = vmatprep.subr.mxu0 0.0
    %132 = vmatpush1.xpose.msra.mxu0 0.0
    %133 = vmatprep.subr.mxu0 0.0
    %134 = vmatpush1.xpose.msra.mxu0 0.0
    %135 = vmatprep.subr.mxu0 0.0
    %136 = vmatpush1.xpose.msra.mxu0 0.0
    %137 = vmatprep.subr.mxu0 0.0
    %138 = vmatpush1.xpose.msra.mxu0 0.0
    %139 = vmatprep.mubr.f32.mxu0 0.0
    %140 = vmatmul.mubr.f32.gmra.mrb[0].mxu0 %v57
    %v141 = vpop.f32.mrb[0].mxu0
    %v142 = vadd.f32 0.0, %v141
    %v143 = vpop.f32.mrb[0].mxu0
    %144 = vdwg.mxu0
    %v145 = vsub.f32 %v58, %v142
    %v146 = vld [vmem:[#allocation2] sm:$0xff]
    %147 = vmatprep.subr.mxu0 0.0
    %148 = vmatpush1.msra.mxu0 %v59
    %149 = vmatprep.subr.mxu0 0.0
    %150 = vmatpush1.msra.mxu0 %v60
    %151 = vmatprep.subr.mxu0 0.0
    %152 = vmatpush1.msra.mxu0 %v61
    %153 = vmatprep.subr.mxu0 0.0
    %154 = vmatpush1.msra.mxu0 %v62
    %155 = vmatprep.subr.mxu0 0.0
    %156 = vmatpush1.msra.mxu0 %v63
    %157 = vmatprep.subr.mxu0 0.0
    %158 = vmatpush1.msra.mxu0 %v64
    %159 = vmatprep.subr.mxu0 0.0
    %160 = vmatpush1.msra.mxu0 %v65
    %161 = vmatprep.subr.mxu0 0.0
    %162 = vmatpush1.msra.mxu0 %v66
    %163 = vmatprep.subr.mxu0 0.0
    %164 = vmatpush1.msra.mxu0 %v67
    %165 = vmatprep.subr.mxu0 0.0
    %166 = vmatpush1.msra.mxu0 %v68
    %167 = vmatprep.subr.mxu0 0.0
    %168 = vmatpush1.msra.mxu0 %v69
    %169 = vmatprep.subr.mxu0 0.0
    %170 = vmatpush1.msra.mxu0 %v70
    %171 = vmatprep.subr.mxu0 0.0
    %172 = vmatpush1.msra.mxu0 %v71
    %173 = vmatprep.subr.mxu0 0.0
    %174 = vmatpush1.msra.mxu0 %v72
    %175 = vmatprep.subr.mxu0 0.0
    %176 = vmatpush1.msra.mxu0 %v73
    %177 = vmatprep.subr.mxu0 0.0
    %178 = vmatpush1.msra.mxu0 %v74
    %179 = vmatprep.subr.mxu0 0.0
    %180 = vmatpush1.msra.mxu0 0.0
    %181 = vmatprep.subr.mxu0 0.0
    %182 = vmatpush1.msra.mxu0 0.0
    %183 = vmatprep.subr.mxu0 0.0
    %184 = vmatpush1.msra.mxu0 0.0
    %185 = vmatprep.subr.mxu0 0.0
    %186 = vmatpush1.msra.mxu0 0.0
    %187 = vmatprep.subr.mxu0 0.0
    %188 = vmatpush1.msra.mxu0 0.0
    %189 = vmatprep.subr.mxu0 0.0
    %190 = vmatpush1.msra.mxu0 0.0
    %191 = vmatprep.subr.mxu0 0.0
    %192 = vmatpush1.msra.mxu0 0.0
    %193 = vmatprep.subr.mxu0 0.0
    %194 = vmatpush1.msra.mxu0 0.0
    %195 = vmatprep.subr.mxu0 0.0
    %196 = vmatpush1.msra.mxu0 0.0
    %197 = vmatprep.subr.mxu0 0.0
    %198 = vmatpush1.msra.mxu0 0.0
    %199 = vmatprep.subr.mxu0 0.0
    %200 = vmatpush1.msra.mxu0 0.0
    %201 = vmatprep.subr.mxu0 0.0
    %202 = vmatpush1.msra.mxu0 0.0
    %203 = vmatprep.subr.mxu0 0.0
    %204 = vmatpush1.msra.mxu0 0.0
    %205 = vmatprep.subr.mxu0 0.0
    %206 = vmatpush1.msra.mxu0 0.0
    %207 = vmatprep.subr.mxu0 0.0
    %208 = vmatpush1.msra.mxu0 0.0
    %209 = vmatprep.subr.mxu0 0.0
    %210 = vmatpush1.msra.mxu0 0.0
    %211 = vmatprep.mubr.f32.mxu0 0.0
    %212 = vmatmul.mubr.f32.gmra.mrb[0].mxu0 %v145
    %v213 = vpop.f32.mrb[0].mxu0
    %v214 = vadd.f32 0.0, %v213
    %v215 = vpop.f32.mrb[0].mxu0
    %216 = vdwg.mxu0
    %v217 = vadd.f32 %v146, %v214
    %218 = vst [vmem:[#allocation2] sm:$0xff] %v217
    // Predicated region
    $region30: #{tpu_custom_call.1} parent=1 // pred_check
      %p219 = pneg %p52
    $region31: #{tpu_custom_call.1} parent=1 // pred_check_branch
      %221 = sbr.rel (%p219) target = $region33
    $region32: #{tpu_custom_call.1} parent=1 // pred_region
      %v222 = vld [vmem:[#allocation2] sm:$0xff]
      %v223 = vmul.f32 %v222, 0.5
      %v224 = vadd.f32 %v57, %v223
      %v225 = vand.u32 2147483647, %v224
      %v226 = vsub.f32 %v225, 0.25
      %v227 = vmax.f32 %v226, 0.0
      %228 = vst [vmem:[#allocation9] sm:$0xff] %v227
    $region33: #{tpu_custom_call.1} parent=1 // pred_fallthru
      _
    // Predicated region
    $region34: #{tpu_custom_call.1} parent=1 // pred_check
      _
    $region35: #{tpu_custom_call.1} parent=1 // pred_check_branch
      %230 = sbr.rel (0) target = $region37
    $region36: #{tpu_custom_call.1} parent=1 // pred_region
      %s232 = ssub.s32 128, 128
      %233 = vsyncadd [#allocation5], %s232
      %s235 = sshll.u32 [#allocation9], 4
      %s236 = int_to_ptr.vmem [resolvable:$true] %s235
      %238 = dma.vmem_to_hbm [thread:$0]  %s236, 128, %s3, [#allocation5]
    $region37: #{tpu_custom_call.1} parent=1 // pred_fallthru
      _
    // Predicated region
    $region38: #{tpu_custom_call.1} parent=1 // pred_check
      _
    $region39: #{tpu_custom_call.1} parent=1 // pred_check_branch
      %240 = sbr.rel (0) target = $region41
    $region40: #{tpu_custom_call.1} parent=1 // pred_region
      %241 = dma.done [#allocation5], 128
    $region41: #{tpu_custom_call.1} parent=1 // pred_fallthru
      _
    %242 = vsyncpa [#allocation4], 1
    %243 = vsyncpa [#allocation7], 1
    %244 = vsyncpa [#allocation5], 1

</llo_original>
